<compile_context>
chip_gen: v7x
topology: tpu7x:2x2x1
jax: 0.10.0
libtpu: 0.0.40
codegen_flags: <defaults>
</compile_context>

<pallas_src>
import jax
import jax.numpy as jnp
from jax.experimental import pallas as pl
from jax.experimental.pallas import tpu as pltpu

# ----------------------------- model dims -----------------------------------
D_X    = 32    # task_net input features
D_T    = 16    # task (second modality) input features
H_NET  = 32    # task_net.hidden_dim
H_ENC  = 32    # task_encoder.hidden_dim
D_LAT  = 16    # lmbd latent dim
LANES  = 128   # TPU vreg lane width

# Batch tiling.  For large batches raise TILE_B to 128 (v5e) / 256 (v6e, v7x)
# to fill the MXU M dimension; 32 keeps the demo shapes small.
TILE_B = 32

# column layout of the fused "heads" matmul result (one 128-lane vreg)
C_GAMMA = 0                    # [  0: 32)  FiLM gamma   (+1 folded into bias)
C_BETA  = H_NET                # [ 32: 64)  FiLM beta
C_MEAN  = 2 * H_NET            # [ 64: 80)  latent mean
C_LOGV  = C_MEAN + D_LAT       # [ 80: 96)  latent logvar
C_REC   = C_LOGV + D_LAT       # [ 96:112)  task reconstruction (wm@wd folded)
# lane 127 of heads is a constant 1 that carries the output-layer bias.

# row layout of the single packed bf16 parameter slab (one DMA for all params)
R_W1   = 0                     # (128,128) block-diag encoder layer 1 (+bias row)
R_W2   = R_W1 + LANES          # (128,128) layer-2 "h2" path (x_enc)   (+bias row)
R_W23  = R_W2 + LANES          # (128,128) folded enc->heads weights   (+bias row)
R_MISC = R_W23 + LANES         # 8 aligned rows: wg, wb, pad...
N_ROWS = R_MISC + 8            # 392 rows total (multiple of 8)


# ------------------------------ the kernel ----------------------------------
def mml_kernel(xt_ref, slab_ref, out_ref, loss_ref):
    xt_f32 = xt_ref[...]                                # (TILE_B,128): x|task|0|1
    xt = xt_f32.astype(jnp.bfloat16)                    # matmul operand only

    w1   = slab_ref[R_W1:R_W1 + LANES, :]               # bf16, 8-aligned reads
    w2   = slab_ref[R_W2:R_W2 + LANES, :]
    w23  = slab_ref[R_W23:R_W23 + LANES, :]
    misc = slab_ref[R_MISC:R_MISC + 8, :].astype(jnp.float32)   # VPU math in f32
    wg, wb = misc[0:1, :], misc[1:2, :]

    # ---- fused task_net.encoder + task_encoder.encoder, layer 1 ------------
    # biases folded via the constant-1 input lane (row 127 of w1).
    h1f = jnp.maximum(
        jnp.dot(xt, w1, preferred_element_type=jnp.float32), 0.0)
    h1 = h1f.astype(jnp.bfloat16)

    # ---- two INDEPENDENT matmuls off h1 (pipeline back-to-back on the MXU) --
    # h2   : lanes [0:32) = x_enc (task_net encoding); rest unused.
    # heads: gamma|beta|mean|logvar|rec (task_encoder layer 2 + all enc heads
    #        + decoder fold pre-multiplied host-side); lane 127 == 1.
    h2    = jnp.dot(h1, w2,  preferred_element_type=jnp.float32)
    heads = jnp.dot(h1, w23, preferred_element_type=jnp.float32)
    # TODO(synk): if lmbd samples z = mean + eps*exp(0.5*logvar) in forward,
    # the host-side decoder fold (wm@wd) must be replaced by an explicit
    # sampled-latent decode.

    # ---- output head (FiLM + Linear(H_NET,1)) as a VPU multiply + reduce ----
    # out = sum_j (x_enc_j*gamma_j + beta_j) * wout_j + bout
    #     = sum_lanes heads * (h2*wg + wb)      (bout rides heads lane 127)
    out = jnp.sum(heads * (h2 * wg + wb), axis=-1, keepdims=True)   # (TILE_B,1)
    out_ref[...] = jnp.broadcast_to(out, out_ref.shape)             # lane-dense

    # ---- per-tile loss partial sums (finalized in the wrapper) --------------
    mean = heads[:, C_MEAN:C_MEAN + D_LAT]
    logv = heads[:, C_LOGV:C_LOGV + D_LAT]
    trec = heads[:, C_REC:C_REC + D_T]
    task = xt_f32[:, D_X:D_X + D_T]                     # exact f32 task

    kl_sum = jnp.sum(1.0 + logv - mean * mean - jnp.exp(logv))
    d = trec - task
    ad = jnp.abs(d)
    l1_sum = jnp.sum(jnp.where(ad < 1.0, 0.5 * d * d, ad - 0.5))  # SmoothL1, beta=1

    lane = jax.lax.broadcasted_iota(jnp.int32, loss_ref.shape, 1)
    loss_ref[...] = jnp.where(lane == 0, kl_sum,
                    jnp.where(lane == 1, l1_sum, 0.0))  # (8,128), lane-dense


# ------------------------------ wrapper --------------------------------------
@jax.jit
def multimodal_learner_forward(x, task, slab):
    """Returns (output (B,1), (total_loss, kl_loss, recon_loss))."""
    b = x.shape[0]
    assert b % TILE_B == 0, "batch must be a multiple of TILE_B"
    n_tiles = b // TILE_B

    # lane-dense packed input: [x | task | 0-pad | 1]; the trailing 1 carries
    # the folded biases through the matmuls.
    xt = jnp.concatenate(
        [x, task,
         jnp.zeros((b, LANES - D_X - D_T - 1), jnp.float32),
         jnp.ones((b, 1), jnp.float32)], axis=1)

    cost = pl.CostEstimate(
        flops=2 * b * LANES * LANES * 3,
        transcendentals=b * D_LAT,
        bytes_accessed=(b * LANES * 4            # xt in
                        + N_ROWS * LANES * 2     # bf16 slab (fetched once)
                        + b * LANES * 4          # out slab
                        + n_tiles * 8 * LANES * 4))

    out_slab, loss_slab = pl.pallas_call(
        mml_kernel,
        grid=(n_tiles,),
        in_specs=[
            pl.BlockSpec((TILE_B, LANES), lambda i: (i, 0)),   # xt: batch-tiled
            pl.BlockSpec((N_ROWS, LANES), lambda i: (0, 0)),   # slab: VMEM-resident
        ],
        out_specs=(
            pl.BlockSpec((TILE_B, LANES), lambda i: (i, 0)),   # output, lane-dense
            pl.BlockSpec((8, LANES), lambda i: (i, 0)),        # per-tile loss partials
        ),
        out_shape=(
            jax.ShapeDtypeStruct((b, LANES), jnp.float32),
            jax.ShapeDtypeStruct((n_tiles * 8, LANES), jnp.float32),
        ),
        compiler_params=pltpu.CompilerParams(
            dimension_semantics=("parallel",)),                # v7x: use both TCs
        cost_estimate=cost,
    )(xt, slab)

    out = out_slab[:, 0:1]
    partials = loss_slab[::8]          # (n_tiles,128); lane0 = KL sum, lane1 = L1 sum
    kl = -0.5 * jnp.sum(partials[:, 0]) / (b * D_LAT)
    rec = jnp.sum(partials[:, 1]) / (b * D_T)
    return out, (rec + kl, kl, rec)


# --------------------------- deterministic params ----------------------------
def make_params(key):
    def lin(key, fan_in, fan_out):
        kw, kb = jax.random.split(key)
        s = 1.0 / jnp.sqrt(jnp.float32(fan_in))
        w = jax.random.uniform(kw, (fan_in, fan_out), jnp.float32, -s, s)
        b = jax.random.uniform(kb, (1, fan_out), jnp.float32, -s, s)
        return w, b

    keys = jax.random.split(key, 10)
    p = {}
    p["wn1"], p["bn1"] = lin(keys[0], D_X, H_NET)
    p["wn2"], p["bn2"] = lin(keys[1], H_NET, H_NET)
    p["we1"], p["be1"] = lin(keys[2], D_T, H_ENC)
    p["we2"], p["be2"] = lin(keys[3], H_ENC, H_ENC)
    p["wm"], p["bm"] = lin(keys[4], H_ENC, D_LAT)
    p["wv"], p["bv"] = lin(keys[5], H_ENC, D_LAT)
    p["wd"], p["bd"] = lin(keys[6], D_LAT, D_T)
    p["wmod"], p["bmod"] = lin(keys[7], H_ENC, 2 * H_NET)
    p["wout"], p["bout"] = lin(keys[8], H_NET, 1)
    return p


def pack_params(p):
    """Build the single (N_ROWS, 128) bf16 parameter slab (once, host-side)."""
    hp = jax.lax.Precision.HIGHEST

    # layer 1: block-diag [x -> task_net hidden | task -> task_encoder hidden]
    # biases in row 127 (picked up by the constant-1 input lane).
    W1 = jnp.zeros((LANES, LANES), jnp.float32)
    W1 = W1.at[0:D_X, 0:H_NET].set(p["wn1"])
    W1 = W1.at[D_X:D_X + D_T, H_NET:H_NET + H_ENC].set(p["we1"])
    W1 = W1.at[LANES - 1, 0:H_NET].set(p["bn1"][0])
    W1 = W1.at[LANES - 1, H_NET:H_NET + H_ENC].set(p["be1"][0])
    W1 = W1.at[LANES - 1, LANES - 1].set(1.0)            # carry the constant lane

    # layer 2 "h2" path: only the task_net half feeds the FiLM output head
    # (the task_encoder half is folded into W23 below).
    W2 = jnp.zeros((LANES, LANES), jnp.float32)
    W2 = W2.at[0:H_NET, 0:H_NET].set(p["wn2"])
    W2 = W2.at[LANES - 1, 0:H_NET].set(p["bn2"][0])

    # fused heads acting on enc: modulation_layer | latent mean | logvar | decoder
    W3h = jnp.zeros((H_ENC, LANES), jnp.float32)
    W3h = W3h.at[:, C_GAMMA:C_GAMMA + H_NET].set(p["wmod"][:, :H_NET])
    W3h = W3h.at[:, C_BETA:C_BETA + H_NET].set(p["wmod"][:, H_NET:])
    W3h = W3h.at[:, C_MEAN:C_MEAN + D_LAT].set(p["wm"])
    W3h = W3h.at[:, C_LOGV:C_LOGV + D_LAT].set(p["wv"])
    W3h = W3h.at[:, C_REC:C_REC + D_T].set(jnp.dot(p["wm"], p["wd"], precision=hp))
    b3 = jnp.zeros((LANES,), jnp.float32)
    b3 = b3.at[C_GAMMA:C_GAMMA + H_NET].set(p["bmod"][0, :H_NET] + 1.0)  # FiLM +1
    b3 = b3.at[C_BETA:C_BETA + H_NET].set(p["bmod"][0, H_NET:])
    b3 = b3.at[C_MEAN:C_MEAN + D_LAT].set(p["bm"][0])
    b3 = b3.at[C_LOGV:C_LOGV + D_LAT].set(p["bv"][0])
    b3 = b3.at[C_REC:C_REC + D_T].set(
        (jnp.dot(p["bm"], p["wd"], precision=hp) + p["bd"])[0])

    # Fold task_encoder layer 2 into the heads so heads depend only on h1:
    #   heads = h1 @ W23,  W23[32:64] = we2 @ W3h,  row 127 = be2 @ W3h + b3.
    W23 = jnp.zeros((LANES, LANES), jnp.float32)
    W23 = W23.at[H_NET:H_NET + H_ENC, :].set(jnp.dot(p["we2"], W3h, precision=hp))
    b23 = jnp.dot(p["be2"], W3h, precision=hp)[0] + b3
    W23 = W23.at[LANES - 1, :].set(b23)
    W23 = W23.at[LANES - 1, LANES - 1].set(1.0)          # heads lane 127 == 1

    # output head as lane weights (VPU reduce; bout rides heads lane 127)
    wout = p["wout"][:, 0]
    wg = jnp.zeros((LANES,), jnp.float32).at[C_GAMMA:C_GAMMA + H_NET].set(wout)
    wb = jnp.zeros((LANES,), jnp.float32).at[C_BETA:C_BETA + H_NET].set(wout)
    wb = wb.at[LANES - 1].set(p["bout"][0, 0])

    # invariants the VPU-reduce output head relies on (review item)
    assert float(jnp.max(jnp.abs(wg[C_MEAN:]))) == 0.0
    assert float(jnp.max(jnp.abs(wb[C_MEAN:LANES - 1]))) == 0.0
    assert float(jnp.max(jnp.abs(W23[:, C_REC + D_T:LANES - 1]))) == 0.0

    slab = jnp.zeros((N_ROWS, LANES), jnp.float32)
    slab = slab.at[R_W1:R_W1 + LANES].set(W1)
    slab = slab.at[R_W2:R_W2 + LANES].set(W2)
    slab = slab.at[R_W23:R_W23 + LANES].set(W23)
    slab = slab.at[R_MISC + 0].set(wg)
    slab = slab.at[R_MISC + 1].set(wb)
    return slab.astype(jnp.bfloat16)                      # bf16 matmul operands


# ------------------------------ reference ------------------------------------
def reference_forward(x, task, p):
    hp = jax.lax.Precision.HIGHEST
    mm = lambda a, b: jnp.dot(a, b, precision=hp)
    h = jnp.maximum(mm(x, p["wn1"]) + p["bn1"], 0.0)
    x_enc = mm(h, p["wn2"]) + p["bn2"]
    he = jnp.maximum(mm(task, p["we1"]) + p["be1"], 0.0)
    enc = mm(he, p["we2"]) + p["be2"]
    mean = mm(enc, p["wm"]) + p["bm"]
    logvar = mm(enc, p["wv"]) + p["bv"]
    task_rec = mm(mean, p["wd"]) + p["bd"]
    kl = -0.5 * jnp.mean(1.0 + logvar - mean**2 - jnp.exp(logvar))
    d = task_rec - task
    ad = jnp.abs(d)
    rec = jnp.mean(jnp.where(ad < 1.0, 0.5 * d * d, ad - 0.5))
    emb = mm(enc, p["wmod"]) + p["bmod"]
    modulated = x_enc * (emb[:, :H_NET] + 1.0) + emb[:, H_NET:]
    out = mm(modulated, p["wout"]) + p["bout"]
    return out, (rec + kl, kl, rec)


# --------------------------------- main ---------------------------------------
if __name__ == "__main__":
    B = 128                                   # multiple of TILE_B -> grid=(4,)
    key = jax.random.PRNGKey(0)
    kx, kt, kp = jax.random.split(key, 3)
    x = jax.random.normal(kx, (B, D_X), jnp.float32)
    task = jax.random.normal(kt, (B, D_T), jnp.float32)
    params = make_params(kp)
    slab = pack_params(params)

    out, (total, kl, rec) = multimodal_learner_forward(x, task, slab)
    jax.block_until_ready((out, total, kl, rec))

    # sanity check vs pure-JAX (unfused, f32) reference; tolerances account
    # for the bf16 weight slab / bf16 matmul operands.
    ref_out, (ref_total, ref_kl, ref_rec) = reference_forward(x, task, params)
    assert out.shape == (B, 1)
    assert jnp.allclose(out, ref_out, atol=3e-2, rtol=3e-2)
    assert jnp.allclose(total, ref_total, atol=1e-2, rtol=5e-2)
    assert jnp.allclose(kl, ref_kl, atol=1e-2, rtol=5e-2)
    assert jnp.allclose(rec, ref_rec, atol=1e-2, rtol=5e-2)

    print("KERNEL_OK")
</pallas_src>

<mosaic_0001>
module attributes {stable_mosaic.version = 11 : i64} {
  func.func @mml_kernel(%arg0: i32, %arg1: memref<32x128xf32, #tpu.memory_space<vmem>>, %arg2: memref<392x128xbf16, #tpu.memory_space<vmem>>, %arg3: memref<32x128xf32, #tpu.memory_space<vmem>>, %arg4: memref<8x128xf32, #tpu.memory_space<vmem>>) attributes {dimension_semantics = [#tpu.dimension_semantics<parallel>], iteration_bounds = array<i64: 4>, scalar_prefetch = 0 : i64, scratch_operands = 0 : i64, tpu.core_type = #tpu.core_type<tc>, window_params = [{transform_indices = @transform_0, window_bounds = array<i64: 32, 128>}, {pipeline_mode = #tpu.pipeline_mode<synchronous>, transform_indices = @transform_1, window_bounds = array<i64: 392, 128>}, {transform_indices = @transform_2, window_bounds = array<i64: 32, 128>}, {transform_indices = @transform_3, window_bounds = array<i64: 8, 128>}]} {
    %c0 = arith.constant 0 : index
    %c0_0 = arith.constant 0 : index
    %0 = vector.load %arg1[%c0, %c0_0] : memref<32x128xf32, #tpu.memory_space<vmem>>, vector<32x128xf32>
    %1 = arith.truncf %0 : vector<32x128xf32> to vector<32x128xbf16>
    %c0_1 = arith.constant 0 : index
    %c0_2 = arith.constant 0 : index
    %2 = vector.load %arg2[%c0_1, %c0_2] : memref<392x128xbf16, #tpu.memory_space<vmem>>, vector<128x128xbf16>
    %c128 = arith.constant 128 : index
    %c0_3 = arith.constant 0 : index
    %3 = vector.load %arg2[%c128, %c0_3] : memref<392x128xbf16, #tpu.memory_space<vmem>>, vector<128x128xbf16>
    %c256 = arith.constant 256 : index
    %c0_4 = arith.constant 0 : index
    %4 = vector.load %arg2[%c256, %c0_4] : memref<392x128xbf16, #tpu.memory_space<vmem>>, vector<128x128xbf16>
    %c384 = arith.constant 384 : index
    %c0_5 = arith.constant 0 : index
    %5 = vector.load %arg2[%c384, %c0_5] : memref<392x128xbf16, #tpu.memory_space<vmem>>, vector<8x128xbf16>
    %6 = arith.extf %5 : vector<8x128xbf16> to vector<8x128xf32>
    %7 = vector.extract_strided_slice %6 {offsets = [0, 0], sizes = [1, 128], strides = [1, 1]} : vector<8x128xf32> to vector<1x128xf32>
    %8 = vector.extract_strided_slice %6 {offsets = [1, 0], sizes = [1, 128], strides = [1, 1]} : vector<8x128xf32> to vector<1x128xf32>
    %cst = arith.constant dense<0.000000e+00> : vector<32x128xf32>
    %9 = tpu.matmul %1, %2, %cst {dimension_numbers = #tpu.dot_dimension_numbers<[1], [0], [0], [1], [0, 0, 1, 1], [], []>} : vector<32x128xbf16>, vector<128x128xbf16>, vector<32x128xf32> -> vector<32x128xf32>
    %cst_6 = arith.constant 0.000000e+00 : f32
    %10 = vector.broadcast %cst_6 : f32 to vector<32x128xf32>
    %11 = arith.maximumf %9, %10 : vector<32x128xf32>
    %12 = arith.truncf %11 : vector<32x128xf32> to vector<32x128xbf16>
    %cst_7 = arith.constant dense<0.000000e+00> : vector<32x128xf32>
    %13 = tpu.matmul %12, %3, %cst_7 {dimension_numbers = #tpu.dot_dimension_numbers<[1], [0], [0], [1], [0, 0, 1, 1], [], []>} : vector<32x128xbf16>, vector<128x128xbf16>, vector<32x128xf32> -> vector<32x128xf32>
    %cst_8 = arith.constant dense<0.000000e+00> : vector<32x128xf32>
    %14 = tpu.matmul %12, %4, %cst_8 {dimension_numbers = #tpu.dot_dimension_numbers<[1], [0], [0], [1], [0, 0, 1, 1], [], []>} : vector<32x128xbf16>, vector<128x128xbf16>, vector<32x128xf32> -> vector<32x128xf32>
    %15 = vector.broadcast %7 : vector<1x128xf32> to vector<32x128xf32>
    %16 = arith.mulf %13, %15 : vector<32x128xf32>
    %17 = vector.broadcast %8 : vector<1x128xf32> to vector<32x128xf32>
    %18 = arith.addf %16, %17 : vector<32x128xf32>
    %19 = arith.mulf %14, %18 : vector<32x128xf32>
    %cst_9 = arith.constant dense<0.000000e+00> : vector<32xf32>
    %20 = vector.multi_reduction <add>, %19, %cst_9 [1] : vector<32x128xf32> to vector<32xf32>
    %21 = vector.shape_cast %20 : vector<32xf32> to vector<32x1xf32>
    %22 = vector.shape_cast %21 : vector<32x1xf32> to vector<32x1xf32>
    %23 = vector.broadcast %22 : vector<32x1xf32> to vector<32x128xf32>
    %c0_10 = arith.constant 0 : index
    %c0_11 = arith.constant 0 : index
    %24 = vector.load %arg3[%c0_10, %c0_11] : memref<32x128xf32, #tpu.memory_space<vmem>>, vector<32x128xf32>
    tpu.vector_store %arg3[%c0_10, %c0_11], %23 {strides = array<i32>} : memref<32x128xf32, #tpu.memory_space<vmem>>, vector<32x128xf32>,
    %25 = vector.extract_strided_slice %14 {offsets = [0, 64], sizes = [32, 16], strides = [1, 1]} : vector<32x128xf32> to vector<32x16xf32>
    %26 = vector.extract_strided_slice %14 {offsets = [0, 80], sizes = [32, 16], strides = [1, 1]} : vector<32x128xf32> to vector<32x16xf32>
    %27 = vector.extract_strided_slice %14 {offsets = [0, 96], sizes = [32, 16], strides = [1, 1]} : vector<32x128xf32> to vector<32x16xf32>
    %28 = vector.extract_strided_slice %0 {offsets = [0, 32], sizes = [32, 16], strides = [1, 1]} : vector<32x128xf32> to vector<32x16xf32>
    %cst_12 = arith.constant 1.000000e+00 : f32
    %29 = vector.broadcast %cst_12 : f32 to vector<32x16xf32>
    %30 = arith.addf %29, %26 : vector<32x16xf32>
    %31 = arith.mulf %25, %25 : vector<32x16xf32>
    %32 = arith.subf %30, %31 : vector<32x16xf32>
    %33 = math.exp %26 : vector<32x16xf32>
    %34 = arith.subf %32, %33 : vector<32x16xf32>
    %35 = vector.shape_cast %34 : vector<32x16xf32> to vector<1x32x16xf32>
    %cst_13 = arith.constant dense<0.000000e+00> : vector<1xf32>
    %36 = vector.multi_reduction <add>, %35, %cst_13 [1, 2] : vector<1x32x16xf32> to vector<1xf32>
    %37 = vector.shape_cast %36 : vector<1xf32> to vector<1x1x1xf32>
    %38 = vector.extract %37[0, 0, 0] : f32 from vector<1x1x1xf32>
    %39 = arith.subf %27, %28 : vector<32x16xf32>
    %40 = math.absf %39 : vector<32x16xf32>
    %cst_14 = arith.constant 1.000000e+00 : f32
    %41 = vector.broadcast %cst_14 : f32 to vector<32x16xf32>
    %42 = arith.cmpf olt, %40, %41 : vector<32x16xf32>
    %cst_15 = arith.constant 5.000000e-01 : f32
    %43 = vector.broadcast %cst_15 : f32 to vector<32x16xf32>
    %44 = arith.mulf %43, %39 : vector<32x16xf32>
    %45 = arith.mulf %44, %39 : vector<32x16xf32>
    %cst_16 = arith.constant 5.000000e-01 : f32
    %46 = vector.broadcast %cst_16 : f32 to vector<32x16xf32>
    %47 = arith.subf %40, %46 : vector<32x16xf32>
    %48 = arith.select %42, %45, %47 : vector<32x16xi1>, vector<32x16xf32>
    %49 = vector.shape_cast %48 : vector<32x16xf32> to vector<1x32x16xf32>
    %cst_17 = arith.constant dense<0.000000e+00> : vector<1xf32>
    %50 = vector.multi_reduction <add>, %49, %cst_17 [1, 2] : vector<1x32x16xf32> to vector<1xf32>
    %51 = vector.shape_cast %50 : vector<1xf32> to vector<1x1x1xf32>
    %52 = vector.extract %51[0, 0, 0] : f32 from vector<1x1x1xf32>
    %53 = tpu.iota {dimensions = array<i32: 1>} : vector<8x128xi32>
    %c0_i32 = arith.constant 0 : i32
    %54 = vector.broadcast %c0_i32 : i32 to vector<8x128xi32>
    %55 = arith.cmpi eq, %53, %54 : vector<8x128xi32>
    %c1_i32 = arith.constant 1 : i32
    %56 = vector.broadcast %c1_i32 : i32 to vector<8x128xi32>
    %57 = arith.cmpi eq, %53, %56 : vector<8x128xi32>
    %cst_18 = arith.constant 0.000000e+00 : f32
    %58 = vector.broadcast %52 : f32 to vector<8x128xf32>
    %59 = vector.broadcast %cst_18 : f32 to vector<8x128xf32>
    %60 = arith.select %57, %58, %59 : vector<8x128xi1>, vector<8x128xf32>
    %61 = vector.broadcast %38 : f32 to vector<8x128xf32>
    %62 = arith.select %55, %61, %60 : vector<8x128xi1>, vector<8x128xf32>
    %c0_19 = arith.constant 0 : index
    %c0_20 = arith.constant 0 : index
    %63 = vector.load %arg4[%c0_19, %c0_20] : memref<8x128xf32, #tpu.memory_space<vmem>>, vector<8x128xf32>
    tpu.vector_store %arg4[%c0_19, %c0_20], %62 {strides = array<i32>} : memref<8x128xf32, #tpu.memory_space<vmem>>, vector<8x128xf32>,
    return
  }
  func.func @transform_0(%arg0: i32) -> (i32, i32) {
    %c0_i32 = arith.constant 0 : i32
    %c0_i32_0 = arith.constant 0 : i32
    return %arg0, %c0_i32 : i32, i32
  }
  func.func @transform_1(%arg0: i32) -> (i32, i32) {
    %c0_i32 = arith.constant 0 : i32
    %c0_i32_0 = arith.constant 0 : i32
    %c0_i32_1 = arith.constant 0 : i32
    return %c0_i32, %c0_i32_0 : i32, i32
  }
  func.func @transform_2(%arg0: i32) -> (i32, i32) {
    %c0_i32 = arith.constant 0 : i32
    %c0_i32_0 = arith.constant 0 : i32
    return %arg0, %c0_i32 : i32, i32
  }
  func.func @transform_3(%arg0: i32) -> (i32, i32) {
    %c0_i32 = arith.constant 0 : i32
    %c0_i32_0 = arith.constant 0 : i32
    return %arg0, %c0_i32 : i32, i32
  }
}

</mosaic_0001>

<llo_original>
// kernel: multimodal_learner_forward.1
$region0: #{multimodal_learner_forward.1}
  #allocation0 [shape = 'u32[]', space=smem, size = 0x4, offset = 0x4, fixed_abs, tag = 'smem constant byte address 0x4 - core index']
  #allocation1 [shape = 'u32[144,128]{1,0:T(1,128)}', space=vmem, size = 0x12000, scoped, tag = 'internal scratch']
  %s0 = inlined_call_operand.vmem [shape: f32[128,128], index: 0, kind: input, shape index: {}]
  %s1 = inlined_call_operand.vmem [shape: bf16[392,128], index: 1, kind: input, shape index: {}]
  %s2 = inlined_call_operand.vmem [shape: f32[128,128], index: 2, kind: output, shape index: {0}]
  %s3 = inlined_call_operand.vmem [shape: f32[32,128], index: 3, kind: output, shape index: {1}]
  %4 = xla_tuple %s2, %s3
  %s5 = sld [smem:[#allocation0]]
  $region49: #{multimodal_learner_forward.1} parent=0
    _
  %s7 = ssub.s32 1, %s5
  %s8 = scalar_select 0, %s7, %s5
  loop: start=0, step=1, limit=6
  $region2: #{multimodal_learner_forward.1} parent=0 // loop_pre_header
    _
  $region3: #{multimodal_learner_forward.1} parent=0 // loop_header
    %s10 = sphi 0, %s14
    %p11 = scmp.ge.s32.totalorder %s10, 6
    %s20 = sphi 0, %s22
    %s23 = sphi 0, %s20
    %s24 = sphi 0, %s23
    %s40 = sphi 0, %s24
    %s44 = sphi 0, %s44
    %s46 = sphi 0, %s44
    %s47 = sphi 0, %s46
    %s61 = sphi 0, %s47
    %s67 = sphi 0, %s69
    %s70 = sphi 0, %s67
    %s71 = sphi 0, %s70
    %s87 = sphi 0, %s71
    %s93 = sphi 0, %s95
    %s96 = sphi 0, %s93
    %s97 = sphi 0, %s96
    %s113 = sphi 0, %s97
  $region4: #{multimodal_learner_forward.1} parent=0 // loop_header_branch
    %13 = sbr.rel (%p11) target = $region8
  $region5: #{multimodal_learner_forward.1} parent=0 // loop_body
    %s15 = ssub.s32 %s10, 1
    %s16 = ssub.s32 %s10, 2
    %s17 = sadd.s32 %s10, 1
    %s18 = ssub.s32 %s10, %s17
    %p19 = scmp.eq.s32.totalorder %s18, 0
    %s21 = sadd.s32 %s20, 1
    %s22 = scalar_select %p19, %s20, %s21
    %p25 = pneg %p19
    %p26 = scmp.eq.s32.totalorder %s10, 3
    %p27 = por %p25, %p26
    %p28 = scmp.ne.s32.totalorder %s20, %s23
    %p29 = scmp.eq.s32.totalorder %s10, 0
    %p30 = por %p28, %p29
    %p31 = scmp.ne.s32.totalorder %s20, %s23
    %p32 = scmp.eq.s32.totalorder %s15, 3
    %p33 = por %p31, %p32
    %p34 = scmp.ne.s32.totalorder %s23, %s24
    %p35 = scmp.eq.s32.totalorder %s15, 0
    %p36 = por %p34, %p35
    %p37 = scmp.ne.s32.totalorder %s23, %s24
    %p38 = scmp.eq.s32.totalorder %s16, 3
    %p39 = por %p37, %p38
    %p41 = scmp.ne.s32.totalorder %s24, %s40
    %p42 = scmp.eq.s32.totalorder %s16, 0
    %p43 = por %p41, %p42
    %s45 = sadd.s32 %s44, 1
    %p48 = scmp.eq.s32.totalorder %s10, 3
    %p49 = scmp.ne.s32.totalorder %s44, %s46
    %p50 = scmp.eq.s32.totalorder %s10, 0
    %p51 = por %p49, %p50
    %p52 = scmp.ne.s32.totalorder %s44, %s46
    %p53 = scmp.eq.s32.totalorder %s15, 3
    %p54 = por %p52, %p53
    %p55 = scmp.ne.s32.totalorder %s46, %s47
    %p56 = scmp.eq.s32.totalorder %s15, 0
    %p57 = por %p55, %p56
    %p58 = scmp.ne.s32.totalorder %s46, %s47
    %p59 = scmp.eq.s32.totalorder %s16, 3
    %p60 = por %p58, %p59
    %p62 = scmp.ne.s32.totalorder %s47, %s61
    %p63 = scmp.eq.s32.totalorder %s16, 0
    %p64 = por %p62, %p63
    %s65 = ssub.s32 %s10, %s17
    %p66 = scmp.eq.s32.totalorder %s65, 0
    %s68 = sadd.s32 %s67, 1
    %s69 = scalar_select %p66, %s67, %s68
    %p72 = pneg %p66
    %p73 = scmp.eq.s32.totalorder %s10, 3
    %p74 = por %p72, %p73
    %p75 = scmp.ne.s32.totalorder %s67, %s70
    %p76 = scmp.eq.s32.totalorder %s10, 0
    %p77 = por %p75, %p76
    %p78 = scmp.ne.s32.totalorder %s67, %s70
    %p79 = scmp.eq.s32.totalorder %s15, 3
    %p80 = por %p78, %p79
    %p81 = scmp.ne.s32.totalorder %s70, %s71
    %p82 = scmp.eq.s32.totalorder %s15, 0
    %p83 = por %p81, %p82
    %p84 = scmp.ne.s32.totalorder %s70, %s71
    %p85 = scmp.eq.s32.totalorder %s16, 3
    %p86 = por %p84, %p85
    %p88 = scmp.ne.s32.totalorder %s71, %s87
    %p89 = scmp.eq.s32.totalorder %s16, 0
    %p90 = por %p88, %p89
    %s91 = ssub.s32 %s10, %s17
    %p92 = scmp.eq.s32.totalorder %s91, 0
    %s94 = sadd.s32 %s93, 1
    %s95 = scalar_select %p92, %s93, %s94
    %p98 = pneg %p92
    %p99 = scmp.eq.s32.totalorder %s10, 3
    %p100 = por %p98, %p99
    %p101 = scmp.ne.s32.totalorder %s93, %s96
    %p102 = scmp.eq.s32.totalorder %s10, 0
    %p103 = por %p101, %p102
    %p104 = scmp.ne.s32.totalorder %s93, %s96
    %p105 = scmp.eq.s32.totalorder %s15, 3
    %p106 = por %p104, %p105
    %p107 = scmp.ne.s32.totalorder %s96, %s97
    %p108 = scmp.eq.s32.totalorder %s15, 0
    %p109 = por %p107, %p108
    %p110 = scmp.ne.s32.totalorder %s96, %s97
    %p111 = scmp.eq.s32.totalorder %s16, 3
    %p112 = por %p110, %p111
    %p114 = scmp.ne.s32.totalorder %s97, %s113
    %p115 = scmp.eq.s32.totalorder %s16, 0
    %p116 = por %p114, %p115
    %p117 = scmp.le.s32.totalorder 1, %s10
    %p118 = scmp.lt.s32.totalorder %s10, 5
    %p119 = pnand %p117, %p118
    %p120 = pneg %p119
    // Predicated region
    $region9: #{multimodal_learner_forward.1} parent=5 // pred_check
      _
    $region10: #{multimodal_learner_forward.1} parent=5 // pred_check_branch
      %122 = sbr.rel (%p119) target = $region12
    $region11: #{multimodal_learner_forward.1} parent=5 // pred_region
      %s123 = ssub.s32 %s10, 1
      // Predicated region
      $region13: #{multimodal_learner_forward.1} parent=11 // pred_check
        %p124 = pneg %p57
      $region14: #{multimodal_learner_forward.1} parent=11 // pred_check_branch
        %126 = sbr.rel (%p124) target = $region16
      $region15: #{multimodal_learner_forward.1} parent=11 // pred_region
        _
      $region16: #{multimodal_learner_forward.1} parent=11 // pred_fallthru
        _
    $region12: #{multimodal_learner_forward.1} parent=5 // pred_fallthru
      _
    %p127 = scmp.lt.s32.totalorder %s10, 4
    // Predicated region
    $region17: #{multimodal_learner_forward.1} parent=5 // pred_check
      %p128 = pneg %p127
    $region18: #{multimodal_learner_forward.1} parent=5 // pred_check_branch
      %130 = sbr.rel (%p128) target = $region20
    $region19: #{multimodal_learner_forward.1} parent=5 // pred_region
      // Predicated region
      $region21: #{multimodal_learner_forward.1} parent=19 // pred_check
        %p131 = pneg %p30
      $region22: #{multimodal_learner_forward.1} parent=19 // pred_check_branch
        %133 = sbr.rel (%p131) target = $region24
      $region23: #{multimodal_learner_forward.1} parent=19 // pred_region
        %s134 = smul.u32 4, %s10
        %p135 = scmp.lt.s32.totalorder %s134, 15
        %s136 = scalar_select %p135, %s134, 15
        %s137 = smul.addr %s136, 8
        %s138 = scalar_lea.vmem %s0, %s137
        %s139 = smul.u32 4, %s10
      $region24: #{multimodal_learner_forward.1} parent=19 // pred_fallthru
        _
    $region20: #{multimodal_learner_forward.1} parent=5 // pred_fallthru
      _
    %p140 = scmp.le.s32.totalorder 1, %s10
    %p141 = scmp.lt.s32.totalorder %s10, 5
    %p142 = pnand %p140, %p141
    %p143 = pneg %p142
    // Predicated region
    $region25: #{multimodal_learner_forward.1} parent=5 // pred_check
      _
    $region26: #{multimodal_learner_forward.1} parent=5 // pred_check_branch
      %145 = sbr.rel (%p142) target = $region28
    $region27: #{multimodal_learner_forward.1} parent=5 // pred_region
      %s146 = ssub.s32 %s10, 1
      %s147 = smul.u32 4, %s15
      %p148 = scmp.lt.s32.totalorder %s147, 15
      %s149 = scalar_select %p148, %s147, 15
      %s150 = smul.addr %s149, 8
      %s151 = scalar_lea.vmem %s0, %s150
      %p152 = pneg %p36
      %p153 = pneg %p33
      %p154 = pneg %p57
      %p155 = pneg %p54
      %p156 = pneg %p83
      %p157 = pneg %p80
      %s158 = smul.u32 4, %s15
      %p159 = scmp.lt.s32.totalorder %s158, 15
      %s160 = scalar_select %p159, %s158, 15
      %s161 = smul.addr %s160, 8
      %s162 = scalar_lea.vmem %s2, %s161
      %p163 = pneg %p109
      %p164 = pneg %p106
      %p165 = scmp.lt.s32.totalorder %s15, 3
      %s166 = scalar_select %p165, %s15, 3
      %s167 = smul.addr %s166, 8
      %s168 = scalar_lea.vmem %s3, %s167
      %s169 = smul.u32 4, %s15
      %p170 = scmp.lt.s32.totalorder %s169, 15
      %s171 = scalar_select %p170, %s169, 15
      %s172 = smul.addr %s171, 8
      %s173 = scalar_lea.vmem %s0, %s172
      %s174 = smul.u32 4, %s15
      %s175 = smul.u32 4, %s15
      %p176 = scmp.lt.s32.totalorder %s175, 15
      %s177 = scalar_select %p176, %s175, 15
      %s178 = smul.addr %s177, 8
      %s179 = scalar_lea.vmem %s2, %s178
      %s180 = smul.u32 4, %s15
      %p181 = scmp.lt.s32.totalorder %s15, 3
      %s182 = scalar_select %p181, %s15, 3
      %s183 = smul.addr %s182, 8
      %s184 = scalar_lea.vmem %s3, %s183
      %v186 = vld [vmem:[%s173] sm:$0xff]
      %v187 = vld [vmem:[%s173 + $0x8] sm:$0xff]
      %v188 = vld [vmem:[%s173 + $0x10] sm:$0xff]
      %v189 = vld [vmem:[%s173 + $0x18] sm:$0xff]
      %v190 = vpack.c.bf16 %v187, %v186
      %v191 = vpack.c.bf16 %v189, %v188
      %v192 = vld [vmem:[%s1] sm:$0xf]
      %v193 = vld [vmem:[%s1 + $0x4] sm:$0xf]
      %v194 = vld [vmem:[%s1 + $0x8] sm:$0xf]
      %v195 = vld [vmem:[%s1 + $0xc] sm:$0xf]
      %v196 = vld [vmem:[%s1 + $0x10] sm:$0xf]
      %v197 = vld [vmem:[%s1 + $0x14] sm:$0xf]
      %v198 = vld [vmem:[%s1 + $0x18] sm:$0xf]
      %v199 = vld [vmem:[%s1 + $0x1c] sm:$0xf]
      %v200 = vld [vmem:[%s1 + $0x20] sm:$0xf]
      %v201 = vld [vmem:[%s1 + $0x24] sm:$0xf]
      %v202 = vld [vmem:[%s1 + $0x28] sm:$0xf]
      %v203 = vld [vmem:[%s1 + $0x2c] sm:$0xf]
      %v204 = vld [vmem:[%s1 + $0x30] sm:$0xf]
      %v205 = vld [vmem:[%s1 + $0x34] sm:$0xf]
      %v206 = vld [vmem:[%s1 + $0x38] sm:$0xf]
      %v207 = vld [vmem:[%s1 + $0x3c] sm:$0xf]
      %v208 = vld [vmem:[%s1 + $0x40] sm:$0xf]
      %v209 = vld [vmem:[%s1 + $0x44] sm:$0xf]
      %v210 = vld [vmem:[%s1 + $0x48] sm:$0xf]
      %v211 = vld [vmem:[%s1 + $0x4c] sm:$0xf]
      %v212 = vld [vmem:[%s1 + $0x50] sm:$0xf]
      %v213 = vld [vmem:[%s1 + $0x54] sm:$0xf]
      %v214 = vld [vmem:[%s1 + $0x58] sm:$0xf]
      %v215 = vld [vmem:[%s1 + $0x5c] sm:$0xf]
      %v216 = vld [vmem:[%s1 + $0x60] sm:$0xf]
      %v217 = vld [vmem:[%s1 + $0x64] sm:$0xf]
      %v218 = vld [vmem:[%s1 + $0x68] sm:$0xf]
      %v219 = vld [vmem:[%s1 + $0x6c] sm:$0xf]
      %v220 = vld [vmem:[%s1 + $0x70] sm:$0xf]
      %v221 = vld [vmem:[%s1 + $0x74] sm:$0xf]
      %v222 = vld [vmem:[%s1 + $0x78] sm:$0xf]
      %v223 = vld [vmem:[%s1 + $0x7c] sm:$0xf]
      %v224 = vld [vmem:[%s1 + $0x80] sm:$0xf]
      %v225 = vld [vmem:[%s1 + $0x84] sm:$0xf]
      %v226 = vld [vmem:[%s1 + $0x88] sm:$0xf]
      %v227 = vld [vmem:[%s1 + $0x8c] sm:$0xf]
      %v228 = vld [vmem:[%s1 + $0x90] sm:$0xf]
      %v229 = vld [vmem:[%s1 + $0x94] sm:$0xf]
      %v230 = vld [vmem:[%s1 + $0x98] sm:$0xf]
      %v231 = vld [vmem:[%s1 + $0x9c] sm:$0xf]
      %v232 = vld [vmem:[%s1 + $0xa0] sm:$0xf]
      %v233 = vld [vmem:[%s1 + $0xa4] sm:$0xf]
      %v234 = vld [vmem:[%s1 + $0xa8] sm:$0xf]
      %v235 = vld [vmem:[%s1 + $0xac] sm:$0xf]
      %v236 = vld [vmem:[%s1 + $0xb0] sm:$0xf]
      %v237 = vld [vmem:[%s1 + $0xb4] sm:$0xf]
      %v238 = vld [vmem:[%s1 + $0xb8] sm:$0xf]
      %v239 = vld [vmem:[%s1 + $0xbc] sm:$0xf]
      %v240 = vld [vmem:[%s1 + $0xc0] sm:$0xf]
      %v241 = vunpack.c.l.bf16 %v240
      %v258 = vunpack.c.l.b16 %v192
      %v259 = vunpack.c.l.b16 %v193
      %v260 = vunpack.c.l.b16 %v194
      %v261 = vunpack.c.l.b16 %v195
      %v262 = vunpack.c.l.b16 %v196
      %v263 = vunpack.c.l.b16 %v197
      %v264 = vunpack.c.l.b16 %v198
      %v265 = vunpack.c.l.b16 %v199
      %v266 = vunpack.c.l.b16 %v200
      %v267 = vunpack.c.l.b16 %v201
      %v268 = vunpack.c.l.b16 %v202
      %v269 = vunpack.c.l.b16 %v203
      %v270 = vunpack.c.l.b16 %v204
      %v271 = vunpack.c.l.b16 %v205
      %v272 = vunpack.c.l.b16 %v206
      %v273 = vunpack.c.l.b16 %v207
      %v274 = vpack.c.b16 %v259, %v258
      %v275 = vpack.c.b16 %v261, %v260
      %v276 = vpack.c.b16 %v263, %v262
      %v277 = vpack.c.b16 %v265, %v264
      %v278 = vpack.c.b16 %v267, %v266
      %v279 = vpack.c.b16 %v269, %v268
      %v280 = vpack.c.b16 %v271, %v270
      %v281 = vpack.c.b16 %v273, %v272
      %290 = vmatprep.subr.bf16.mxu0 0
      %291 = vmatpush1.bf16.msra.mxu0 %v274
      %292 = vmatprep.subr.bf16.mxu0 0
      %293 = vmatpush1.bf16.msra.mxu0 %v275
      %294 = vmatprep.subr.bf16.mxu0 0
      %295 = vmatpush1.bf16.msra.mxu0 %v276
      %296 = vmatprep.subr.bf16.mxu0 0
      %297 = vmatpush1.bf16.msra.mxu0 %v277
      %298 = vmatprep.subr.bf16.mxu0 0
      %299 = vmatpush1.bf16.msra.mxu0 %v278
      %300 = vmatprep.subr.bf16.mxu0 0
      %301 = vmatpush1.bf16.msra.mxu0 %v279
      %302 = vmatprep.subr.bf16.mxu0 0
      %303 = vmatpush1.bf16.msra.mxu0 %v280
      %304 = vmatprep.subr.bf16.mxu0 0
      %305 = vmatpush1.bf16.msra.mxu0 %v281
      %306 = vmatprep.subr.bf16.mxu0 0
      %307 = vmatpush1.bf16.msra.mxu0 0
      %308 = vmatprep.subr.bf16.mxu0 0
      %309 = vmatpush1.bf16.msra.mxu0 0
      %310 = vmatprep.subr.bf16.mxu0 0
      %311 = vmatpush1.bf16.msra.mxu0 0
      %312 = vmatprep.subr.bf16.mxu0 0
      %313 = vmatpush1.bf16.msra.mxu0 0
      %314 = vmatprep.subr.bf16.mxu0 0
      %315 = vmatpush1.bf16.msra.mxu0 0
      %316 = vmatprep.subr.bf16.mxu0 0
      %317 = vmatpush1.bf16.msra.mxu0 0
      %318 = vmatprep.subr.bf16.mxu0 0
      %319 = vmatpush1.bf16.msra.mxu0 0
      %320 = vmatprep.subr.bf16.mxu0 0
      %321 = vmatpush1.bf16.msra.mxu0 0
      %322 = vmatprep.mubr.bf16.mxu0 0
      %323 = vmatmul.mubr.bf16.gmra.mrb[0].mxu0 %v190
      %v324 = vpop.f32.mrb[0].mxu0
      %v325 = vadd.f32 0.0, %v324
      %v326 = vpop.f32.mrb[0].mxu0
      %v327 = vpop.f32.mrb[0].mxu0
      %v328 = vadd.f32 0.0, %v327
      %v329 = vpop.f32.mrb[0].mxu0
      %330 = vmatprep.mubr.bf16.mxu0 0
      %331 = vmatmul.mubr.bf16.gmra.mrb[0].mxu0 %v191
      %v332 = vpop.f32.mrb[0].mxu0
      %v333 = vadd.f32 0.0, %v332
      %v334 = vpop.f32.mrb[0].mxu0
      %v335 = vpop.f32.mrb[0].mxu0
      %v336 = vadd.f32 0.0, %v335
      %v337 = vpop.f32.mrb[0].mxu0
      %338 = vdwg.mxu0
      %v339 = vmax.f32 %v325, 0.0
      %v340 = vmax.f32 %v328, 0.0
      %v341 = vmax.f32 %v333, 0.0
      %v342 = vmax.f32 %v336, 0.0
      %v343 = vpack.c.bf16 %v340, %v339
      %v344 = vpack.c.bf16 %v342, %v341
      %v361 = vunpack.c.l.b16 %v208
      %v362 = vunpack.c.l.b16 %v209
      %v363 = vunpack.c.l.b16 %v210
      %v364 = vunpack.c.l.b16 %v211
      %v365 = vunpack.c.l.b16 %v212
      %v366 = vunpack.c.l.b16 %v213
      %v367 = vunpack.c.l.b16 %v214
      %v368 = vunpack.c.l.b16 %v215
      %v369 = vunpack.c.l.b16 %v216
      %v370 = vunpack.c.l.b16 %v217
      %v371 = vunpack.c.l.b16 %v218
      %v372 = vunpack.c.l.b16 %v219
      %v373 = vunpack.c.l.b16 %v220
      %v374 = vunpack.c.l.b16 %v221
      %v375 = vunpack.c.l.b16 %v222
      %v376 = vunpack.c.l.b16 %v223
      %v377 = vpack.c.b16 %v362, %v361
      %v378 = vpack.c.b16 %v364, %v363
      %v379 = vpack.c.b16 %v366, %v365
      %v380 = vpack.c.b16 %v368, %v367
      %v381 = vpack.c.b16 %v370, %v369
      %v382 = vpack.c.b16 %v372, %v371
      %v383 = vpack.c.b16 %v374, %v373
      %v384 = vpack.c.b16 %v376, %v375
      %393 = vmatprep.subr.bf16.mxu0 0
      %394 = vmatpush1.bf16.msra.mxu0 %v377
      %395 = vmatprep.subr.bf16.mxu0 0
      %396 = vmatpush1.bf16.msra.mxu0 %v378
      %397 = vmatprep.subr.bf16.mxu0 0
      %398 = vmatpush1.bf16.msra.mxu0 %v379
      %399 = vmatprep.subr.bf16.mxu0 0
      %400 = vmatpush1.bf16.msra.mxu0 %v380
      %401 = vmatprep.subr.bf16.mxu0 0
      %402 = vmatpush1.bf16.msra.mxu0 %v381
      %403 = vmatprep.subr.bf16.mxu0 0
      %404 = vmatpush1.bf16.msra.mxu0 %v382
      %405 = vmatprep.subr.bf16.mxu0 0
      %406 = vmatpush1.bf16.msra.mxu0 %v383
      %407 = vmatprep.subr.bf16.mxu0 0
      %408 = vmatpush1.bf16.msra.mxu0 %v384
      %409 = vmatprep.subr.bf16.mxu0 0
      %410 = vmatpush1.bf16.msra.mxu0 0
      %411 = vmatprep.subr.bf16.mxu0 0
      %412 = vmatpush1.bf16.msra.mxu0 0
      %413 = vmatprep.subr.bf16.mxu0 0
      %414 = vmatpush1.bf16.msra.mxu0 0
      %415 = vmatprep.subr.bf16.mxu0 0
      %416 = vmatpush1.bf16.msra.mxu0 0
      %417 = vmatprep.subr.bf16.mxu0 0
      %418 = vmatpush1.bf16.msra.mxu0 0
      %419 = vmatprep.subr.bf16.mxu0 0
      %420 = vmatpush1.bf16.msra.mxu0 0
      %421 = vmatprep.subr.bf16.mxu0 0
      %422 = vmatpush1.bf16.msra.mxu0 0
      %423 = vmatprep.subr.bf16.mxu0 0
      %424 = vmatpush1.bf16.msra.mxu0 0
      %425 = vmatprep.mubr.bf16.mxu0 0
      %426 = vmatmul.mubr.bf16.gmra.mrb[0].mxu0 %v343
      %v427 = vpop.f32.mrb[0].mxu0
      %v428 = vadd.f32 0.0, %v427
      %v429 = vpop.f32.mrb[0].mxu0
      %v430 = vpop.f32.mrb[0].mxu0
      %v431 = vadd.f32 0.0, %v430
      %v432 = vpop.f32.mrb[0].mxu0
      %433 = vmatprep.mubr.bf16.mxu0 0
      %434 = vmatmul.mubr.bf16.gmra.mrb[0].mxu0 %v344
      %v435 = vpop.f32.mrb[0].mxu0
      %v436 = vadd.f32 0.0, %v435
      %v437 = vpop.f32.mrb[0].mxu0
      %v438 = vpop.f32.mrb[0].mxu0
      %v439 = vadd.f32 0.0, %v438
      %v440 = vpop.f32.mrb[0].mxu0
      %441 = vdwg.mxu0
      %v458 = vunpack.c.l.b16 %v224
      %v459 = vunpack.c.l.b16 %v225
      %v460 = vunpack.c.l.b16 %v226
      %v461 = vunpack.c.l.b16 %v227
      %v462 = vunpack.c.l.b16 %v228
      %v463 = vunpack.c.l.b16 %v229
      %v464 = vunpack.c.l.b16 %v230
      %v465 = vunpack.c.l.b16 %v231
      %v466 = vunpack.c.l.b16 %v232
      %v467 = vunpack.c.l.b16 %v233
      %v468 = vunpack.c.l.b16 %v234
      %v469 = vunpack.c.l.b16 %v235
      %v470 = vunpack.c.l.b16 %v236
      %v471 = vunpack.c.l.b16 %v237
      %v472 = vunpack.c.l.b16 %v238
      %v473 = vunpack.c.l.b16 %v239
      %v474 = vpack.c.b16 %v459, %v458
      %v475 = vpack.c.b16 %v461, %v460
      %v476 = vpack.c.b16 %v463, %v462
      %v477 = vpack.c.b16 %v465, %v464
      %v478 = vpack.c.b16 %v467, %v466
      %v479 = vpack.c.b16 %v469, %v468
      %v480 = vpack.c.b16 %v471, %v470
      %v481 = vpack.c.b16 %v473, %v472
      %490 = vmatprep.subr.bf16.mxu0 0
      %491 = vmatpush1.bf16.msra.mxu0 %v474
      %492 = vmatprep.subr.bf16.mxu0 0
      %493 = vmatpush1.bf16.msra.mxu0 %v475
      %494 = vmatprep.subr.bf16.mxu0 0
      %495 = vmatpush1.bf16.msra.mxu0 %v476
      %496 = vmatprep.subr.bf16.mxu0 0
      %497 = vmatpush1.bf16.msra.mxu0 %v477
      %498 = vmatprep.subr.bf16.mxu0 0
      %499 = vmatpush1.bf16.msra.mxu0 %v478
      %500 = vmatprep.subr.bf16.mxu0 0
      %501 = vmatpush1.bf16.msra.mxu0 %v479
      %502 = vmatprep.subr.bf16.mxu0 0
      %503 = vmatpush1.bf16.msra.mxu0 %v480
      %504 = vmatprep.subr.bf16.mxu0 0
      %505 = vmatpush1.bf16.msra.mxu0 %v481
      %506 = vmatprep.subr.bf16.mxu0 0
      %507 = vmatpush1.bf16.msra.mxu0 0
      %508 = vmatprep.subr.bf16.mxu0 0
      %509 = vmatpush1.bf16.msra.mxu0 0
      %510 = vmatprep.subr.bf16.mxu0 0
      %511 = vmatpush1.bf16.msra.mxu0 0
      %512 = vmatprep.subr.bf16.mxu0 0
      %513 = vmatpush1.bf16.msra.mxu0 0
      %514 = vmatprep.subr.bf16.mxu0 0
      %515 = vmatpush1.bf16.msra.mxu0 0
      %516 = vmatprep.subr.bf16.mxu0 0
      %517 = vmatpush1.bf16.msra.mxu0 0
      %518 = vmatprep.subr.bf16.mxu0 0
      %519 = vmatpush1.bf16.msra.mxu0 0
      %520 = vmatprep.subr.bf16.mxu0 0
      %521 = vmatpush1.bf16.msra.mxu0 0
      %522 = vmatprep.mubr.bf16.mxu0 0
      %523 = vmatmul.mubr.bf16.gmra.mrb[0].mxu0 %v343
      %v524 = vpop.f32.mrb[0].mxu0
      %v525 = vadd.f32 0.0, %v524
      %v526 = vpop.f32.mrb[0].mxu0
      %v527 = vpop.f32.mrb[0].mxu0
      %v528 = vadd.f32 0.0, %v527
      %v529 = vpop.f32.mrb[0].mxu0
      %530 = vmatprep.mubr.bf16.mxu0 0
      %531 = vmatmul.mubr.bf16.gmra.mrb[0].mxu0 %v344
      %v532 = vpop.f32.mrb[0].mxu0
      %v533 = vadd.f32 0.0, %v532
      %v534 = vpop.f32.mrb[0].mxu0
      %v535 = vpop.f32.mrb[0].mxu0
      %v536 = vadd.f32 0.0, %v535
      %v537 = vpop.f32.mrb[0].mxu0
      %538 = vdwg.mxu0
      %v539 = vlaneseq
      %v540 = vshrl.u32 %v539, 7
      %v541 = vsub.s32 0, %v540
      %v542 = vrot.slane %v241, %v541
      %v543 = vmul.f32 %v428, %v542
      %v544 = vmul.f32 %v431, %v542
      %v545 = vmul.f32 %v436, %v542
      %v546 = vmul.f32 %v439, %v542
      %v547 = vlaneseq
      %v548 = vshrl.u32 %v547, 7
      %v549 = vsub.s32 1, %v548
      %v550 = vrot.slane %v241, %v549
      %v551 = vadd.f32 %v543, %v550
      %v552 = vadd.f32 %v544, %v550
      %v553 = vadd.f32 %v545, %v550
      %v554 = vadd.f32 %v546, %v550
      %v555 = vmul.f32 %v525, %v551
      %v556 = vmul.f32 %v528, %v552
      %v557 = vmul.f32 %v533, %v553
      %v558 = vmul.f32 %v536, %v554
      %559 = vadd.xlane.f32.xlu0 %v555
      %v560 = vpop.xlane.xlu0 %559
      %561 = vadd.xlane.f32.xlu0 %v556
      %v562 = vpop.xlane.xlu0 %561
      %563 = vadd.xlane.f32.xlu0 %v557
      %v564 = vpop.xlane.xlu0 %563
      %565 = vadd.xlane.f32.xlu0 %v558
      %v566 = vpop.xlane.xlu0 %565
      %567 = vst [vmem:[%s179] sm:$0xff] %v560
      %568 = vst [vmem:[%s179 + $0x8] sm:$0xff] %v562
      %569 = vst [vmem:[%s179 + $0x10] sm:$0xff] %v564
      %570 = vst [vmem:[%s179 + $0x18] sm:$0xff] %v566
      %v571 = vadd.f32 %v525, 1.0
      %v572 = vadd.f32 %v528, 1.0
      %v573 = vadd.f32 %v533, 1.0
      %v574 = vadd.f32 %v536, 1.0
      %v575 = vmul.f32 %v525, %v525
      %v576 = vmul.f32 %v528, %v528
      %v577 = vmul.f32 %v533, %v533
      %v578 = vmul.f32 %v536, %v536
      %583 = vrot.lane.b32.xlu0 %v575, 16
      %v584 = vpop.permute.xlu0 %583
      %585 = vrot.lane.b32.xlu0 %v576, 16
      %v586 = vpop.permute.xlu0 %585
      %587 = vrot.lane.b32.xlu0 %v577, 16
      %v588 = vpop.permute.xlu0 %587
      %589 = vrot.lane.b32.xlu0 %v578, 16
      %v590 = vpop.permute.xlu0 %589
      %v595 = vsub.f32 %v571, %v584
      %v596 = vsub.f32 %v572, %v586
      %v597 = vsub.f32 %v573, %v588
      %v598 = vsub.f32 %v574, %v590
      %v599 = vmul.f32 %v525, 1.442695
      %v600 = vpow.pop %v599
      %v601 = vmul.f32 %v528, 1.442695
      %v602 = vpow.pop %v601
      %v603 = vmul.f32 %v533, 1.442695
      %v604 = vpow.pop %v603
      %v605 = vmul.f32 %v536, 1.442695
      %v606 = vpow.pop %v605
      %v607 = vsub.f32 %v595, %v600
      %v608 = vsub.f32 %v596, %v602
      %v609 = vsub.f32 %v597, %v604
      %v610 = vsub.f32 %v598, %v606
      %615 = vrot.lane.b32.xlu0 %v607, 48
      %v616 = vpop.permute.xlu0 %615
      %617 = vrot.lane.b32.xlu0 %v608, 48
      %v618 = vpop.permute.xlu0 %617
      %619 = vrot.lane.b32.xlu0 %v609, 48
      %v620 = vpop.permute.xlu0 %619
      %621 = vrot.lane.b32.xlu0 %v610, 48
      %v622 = vpop.permute.xlu0 %621
      %vm627 = vcmask 130048
      %v628 = vsel %vm627, %v616, 0.0
      %v629 = vsel %vm627, %v618, 0.0
      %v630 = vadd.f32 %v628, %v629
      %v631 = vsel %vm627, %v620, 0.0
      %v632 = vadd.f32 %v630, %v631
      %v633 = vsel %vm627, %v622, 0.0
      %v634 = vadd.f32 %v632, %v633
      %635 = vadd.xlane.f32.xlu0 %v634
      %v636 = vpop.xlane.xlu0 %635
      %v637 = vrot.slane %v636, 4
      %v638 = vadd.f32 %v636, %v637
      %v639 = vrot.slane %v638, 2
      %v640 = vadd.f32 %v638, %v639
      %v641 = vrot.slane %v640, 1
      %v642 = vadd.f32 %v640, %v641
      %s643 = vtos %v642
      %648 = vrot.lane.b32.xlu0 %v186, 64
      %v649 = vpop.permute.xlu0 %648
      %650 = vrot.lane.b32.xlu0 %v187, 64
      %v651 = vpop.permute.xlu0 %650
      %652 = vrot.lane.b32.xlu0 %v188, 64
      %v653 = vpop.permute.xlu0 %652
      %654 = vrot.lane.b32.xlu0 %v189, 64
      %v655 = vpop.permute.xlu0 %654
      %v660 = vsub.f32 %v525, %v649
      %v661 = vsub.f32 %v528, %v651
      %v662 = vsub.f32 %v533, %v653
      %v663 = vsub.f32 %v536, %v655
      %v664 = vand.u32 2147483647, %v660
      %v665 = vand.u32 2147483647, %v661
      %v666 = vand.u32 2147483647, %v662
      %v667 = vand.u32 2147483647, %v663
      %vm668 = vcmp.lt.f32.partialorder %v664, 1.0
      %vm669 = vcmp.lt.f32.partialorder %v665, 1.0
      %vm670 = vcmp.lt.f32.partialorder %v666, 1.0
      %vm671 = vcmp.lt.f32.partialorder %v667, 1.0
      %v672 = vmul.f32 %v660, 0.5
      %v673 = vmul.f32 %v661, 0.5
      %v674 = vmul.f32 %v662, 0.5
      %v675 = vmul.f32 %v663, 0.5
      %v676 = vmul.f32 %v672, %v660
      %v677 = vmul.f32 %v673, %v661
      %v678 = vmul.f32 %v674, %v662
      %v679 = vmul.f32 %v675, %v663
      %v680 = vsub.f32 %v664, 0.5
      %v681 = vsub.f32 %v665, 0.5
      %v682 = vsub.f32 %v666, 0.5
      %v683 = vsub.f32 %v667, 0.5
      %v684 = vsel %vm668, %v676, %v680
      %v685 = vsel %vm669, %v677, %v681
      %v686 = vsel %vm670, %v678, %v682
      %v687 = vsel %vm671, %v679, %v683
      %692 = vrot.lane.b32.xlu0 %v684, 32
      %v693 = vpop.permute.xlu0 %692
      %694 = vrot.lane.b32.xlu0 %v685, 32
      %v695 = vpop.permute.xlu0 %694
      %696 = vrot.lane.b32.xlu0 %v686, 32
      %v697 = vpop.permute.xlu0 %696
      %698 = vrot.lane.b32.xlu0 %v687, 32
      %v699 = vpop.permute.xlu0 %698
      %v704 = vsel %vm627, %v693, 0.0
      %v705 = vsel %vm627, %v695, 0.0
      %v706 = vadd.f32 %v704, %v705
      %v707 = vsel %vm627, %v697, 0.0
      %v708 = vadd.f32 %v706, %v707
      %v709 = vsel %vm627, %v699, 0.0
      %v710 = vadd.f32 %v708, %v709
      %711 = vadd.xlane.f32.xlu0 %v710
      %v712 = vpop.xlane.xlu0 %711
      %v713 = vrot.slane %v712, 4
      %v714 = vadd.f32 %v712, %v713
      %v715 = vrot.slane %v714, 2
      %v716 = vadd.f32 %v714, %v715
      %v717 = vrot.slane %v716, 1
      %v718 = vadd.f32 %v716, %v717
      %s719 = vtos %v718
      %v720 = vlaneseq
      %v721 = vand.u32 %v720, 127
      %vm722 = vcmp.eq.s32.totalorder %v721, 0
      %vm723 = vcmp.eq.s32.totalorder %v721, 1
      %v724 = vstv %s719
      %v725 = vsel %vm723, %v724, 0.0
      %v726 = vstv %s643
      %v727 = vsel %vm722, %v726, %v725
      %728 = vst [vmem:[%s184] sm:$0xff] %v727
      %s729 = smul.u32 4, %s15
      %p730 = scmp.lt.s32.totalorder %s729, 15
      %s731 = scalar_select %p730, %s729, 15
      %s732 = smul.addr %s731, 8
      %s733 = scalar_lea.vmem %s2, %s732
      %p734 = scmp.lt.s32.totalorder %s15, 3
      %s735 = scalar_select %p734, %s15, 3
      %s736 = smul.addr %s735, 8
      %s737 = scalar_lea.vmem %s3, %s736
      // Predicated region
      $region29: #{multimodal_learner_forward.1} parent=27 // pred_check
        %p738 = pneg %p80
      $region30: #{multimodal_learner_forward.1} parent=27 // pred_check_branch
        %740 = sbr.rel (%p738) target = $region32
      $region31: #{multimodal_learner_forward.1} parent=27 // pred_region
        %s741 = smul.u32 4, %s15
      $region32: #{multimodal_learner_forward.1} parent=27 // pred_fallthru
        _
      // Predicated region
      $region33: #{multimodal_learner_forward.1} parent=27 // pred_check
        %p742 = pneg %p106
      $region34: #{multimodal_learner_forward.1} parent=27 // pred_check_branch
        %744 = sbr.rel (%p742) target = $region36
      $region35: #{multimodal_learner_forward.1} parent=27 // pred_region
        _
      $region36: #{multimodal_learner_forward.1} parent=27 // pred_fallthru
        _
    $region28: #{multimodal_learner_forward.1} parent=5 // pred_fallthru
      _
    %p745 = scmp.le.s32.totalorder 2, %s10
    // Predicated region
    $region37: #{multimodal_learner_forward.1} parent=5 // pred_check
      %p746 = pneg %p745
    $region38: #{multimodal_learner_forward.1} parent=5 // pred_check_branch
      %748 = sbr.rel (%p746) target = $region40
    $region39: #{multimodal_learner_forward.1} parent=5 // pred_region
      %s749 = ssub.s32 %s10, 2
      // Predicated region
      $region41: #{multimodal_learner_forward.1} parent=39 // pred_check
        %p750 = pneg %p86
      $region42: #{multimodal_learner_forward.1} parent=39 // pred_check_branch
        %752 = sbr.rel (%p750) target = $region44
      $region43: #{multimodal_learner_forward.1} parent=39 // pred_region
        %s753 = smul.u32 4, %s16
        %p754 = scmp.lt.s32.totalorder %s753, 15
        %s755 = scalar_select %p754, %s753, 15
        %s756 = smul.addr %s755, 8
        %s757 = scalar_lea.vmem %s2, %s756
      $region44: #{multimodal_learner_forward.1} parent=39 // pred_fallthru
        _
      // Predicated region
      $region45: #{multimodal_learner_forward.1} parent=39 // pred_check
        %p758 = pneg %p112
      $region46: #{multimodal_learner_forward.1} parent=39 // pred_check_branch
        %760 = sbr.rel (%p758) target = $region48
      $region47: #{multimodal_learner_forward.1} parent=39 // pred_region
        %p761 = scmp.lt.s32.totalorder %s16, 3
        %s762 = scalar_select %p761, %s16, 3
        %s763 = smul.addr %s762, 8
        %s764 = scalar_lea.vmem %s3, %s763
      $region48: #{multimodal_learner_forward.1} parent=39 // pred_fallthru
        _
    $region40: #{multimodal_learner_forward.1} parent=5 // pred_fallthru
      _
  $region6: #{multimodal_learner_forward.1} parent=0 // loop_footer
    %s14 = sadd.s32 1, %s10
  $region7: #{multimodal_learner_forward.1} parent=0 // loop_footer_branch
    %9 = sbr.rel target = $region3
  $region8: #{multimodal_learner_forward.1} parent=0 // loop_exit
    _

</llo_original>
